<compile_context>
chip_gen: v6e
topology: v6e:2x2x1
jax: 0.10.0
libtpu: 0.0.40
codegen_flags: <defaults>
</compile_context>

<pallas_src>
import functools

import jax
import jax.numpy as jnp
from jax.experimental import pallas as pl
from jax.experimental.pallas import tpu as pltpu

_PAD = 128  # lane width; every layer width is zero-padded to this


def _qnet_kernel(x_ref, w_ref, misc_ref, o_ref):
    # x_ref:    [TILE_B, 2]     batch tile of input rows
    # w_ref:    [4, 128, 128]   zero-padded W2..W5, already in [in, out] layout
    # misc_ref: [8, 128]        rows 0,1 = W1 input rows (padded); rows 2..6 = b1..b5
    # o_ref:    [TILE_B, 128]   lane-dense padded output (cols 2..127 are zero)
    x = x_ref[...]
    misc = misc_ref[...]

    # Layer 1: K=2 contraction as two broadcast FMAs on the VPU (skip the MXU).
    h = (x[:, 0:1] * misc[0:1, :]
         + x[:, 1:2] * misc[1:2, :]
         + misc[2:3, :])
    h = jnp.maximum(h, 0.0)                                          # [T, 128]

    # Layers 2-4: zero-padded 128x128 matmuls on the MXU, bias+ReLU on the VPU.
    h = jnp.maximum(jnp.dot(h, w_ref[0], preferred_element_type=jnp.float32)
                    + misc[3:4, :], 0.0)
    h = jnp.maximum(jnp.dot(h, w_ref[1], preferred_element_type=jnp.float32)
                    + misc[4:5, :], 0.0)
    h = jnp.maximum(jnp.dot(h, w_ref[2], preferred_element_type=jnp.float32)
                    + misc[5:6, :], 0.0)

    # Layer 5 (no ReLU): unmasked full-lane 128-wide store.
    o_ref[...] = (jnp.dot(h, w_ref[3], preferred_element_type=jnp.float32)
                  + misc[6:7, :])


def pack_params(params):
    """One-time repack of PyTorch-layout params into two padded VMEM slabs.

    Call once outside the hot path so transposes / padding never run per
    forward call.
    """
    # W2..W5 -> [4, 128, 128], transposed to [in, out], zero-padded.
    w_slab = jnp.zeros((4, _PAD, _PAD), jnp.float32)
    for idx, i in enumerate(range(2, 6)):
        w = jnp.asarray(params[f"w{i}"], jnp.float32).T          # [in, out]
        w_slab = w_slab.at[idx, :w.shape[0], :w.shape[1]].set(w)

    # misc slab: rows 0,1 = W1 rows (one per input feature), rows 2..6 = b1..b5.
    misc = jnp.zeros((8, _PAD), jnp.float32)
    w1 = jnp.asarray(params["w1"], jnp.float32).T                # [2, 64]
    misc = misc.at[0, :w1.shape[1]].set(w1[0])
    misc = misc.at[1, :w1.shape[1]].set(w1[1])
    for idx, i in enumerate(range(1, 6)):
        b = jnp.asarray(params[f"b{i}"], jnp.float32)
        misc = misc.at[2 + idx, :b.shape[0]].set(b)
    return w_slab, misc


def _round_up(n, m):
    return ((n + m - 1) // m) * m


@functools.partial(jax.jit, static_argnames=("tile_b",))
def qnetwork_forward(x, packed, *, tile_b=1024):
    """x: [B, 2] float32. packed: output of pack_params(params)."""
    w_slab, misc = packed
    B = x.shape[0]

    # Batch tiling: tile must be a multiple of 8 (sublane); pad B up to a
    # multiple of the tile and slice the padded rows / lanes off afterwards
    # (fused into this jit'ed program).
    tile_b = min(tile_b, _round_up(B, 8))
    b_pad = _round_up(B, tile_b)
    x_p = x.astype(jnp.float32)
    if b_pad != B:
        x_p = jnp.pad(x_p, ((0, b_pad - B), (0, 0)))

    out = pl.pallas_call(
        _qnet_kernel,
        out_shape=jax.ShapeDtypeStruct((b_pad, _PAD), jnp.float32),
        grid_spec=pltpu.PrefetchScalarGridSpec(
            num_scalar_prefetch=0,
            grid=(b_pad // tile_b,),
            in_specs=[
                pl.BlockSpec((tile_b, 2), lambda i: (i, 0)),         # batch-tiled rows
                pl.BlockSpec((4, _PAD, _PAD), lambda i: (0, 0, 0)),  # resident weights
                pl.BlockSpec((8, _PAD), lambda i: (0, 0)),           # resident W1/biases
            ],
            out_specs=pl.BlockSpec((tile_b, _PAD), lambda i: (i, 0)),
        ),
        compiler_params=pltpu.CompilerParams(
            dimension_semantics=("parallel",)),   # shards batch tiles over v7x's 2 TCs
    )(x_p, w_slab, misc)

    return out[:B, :2]


def _init_params(key):
    """Deterministic init mimicking nn.Linear default (uniform +/- 1/sqrt(fan_in))."""
    sizes = [(2, 64), (64, 64), (64, 32), (32, 32), (32, 2)]
    params = {}
    for i, (fan_in, fan_out) in enumerate(sizes, start=1):
        key, kw, kb = jax.random.split(key, 3)
        bound = 1.0 / jnp.sqrt(jnp.float32(fan_in))
        params[f"w{i}"] = jax.random.uniform(
            kw, (fan_out, fan_in), jnp.float32, -bound, bound)
        params[f"b{i}"] = jax.random.uniform(
            kb, (fan_out,), jnp.float32, -bound, bound)
    return params


def _reference_forward(x, params):
    h = x
    for i in range(1, 5):
        h = jnp.maximum(h @ params[f"w{i}"].T + params[f"b{i}"], 0.0)
    return h @ params["w5"].T + params["b5"]


if __name__ == "__main__":
    key = jax.random.PRNGKey(0)
    key, kx = jax.random.split(key)

    batch = 8
    x = jax.random.normal(kx, (batch, 2), jnp.float32)   # state = (2,) features
    params = _init_params(key)
    packed = pack_params(params)                          # hoisted out of hot path

    out = qnetwork_forward(x, packed)
    out = jax.block_until_ready(out)

    ref = _reference_forward(x, params)
    assert out.shape == (batch, 2), out.shape
    assert jnp.allclose(out, ref, atol=1e-4, rtol=1e-4), "mismatch vs reference"

    print("KERNEL_OK")
</pallas_src>

<mosaic_0001>
module attributes {stable_mosaic.version = 11 : i64} {
  func.func @_qnet_kernel(%arg0: i32, %arg1: memref<8x2xf32, #tpu.memory_space<vmem>>, %arg2: memref<4x128x128xf32, #tpu.memory_space<vmem>>, %arg3: memref<8x128xf32, #tpu.memory_space<vmem>>, %arg4: memref<8x128xf32, #tpu.memory_space<vmem>>) attributes {dimension_semantics = [#tpu.dimension_semantics<parallel>], iteration_bounds = array<i64: 1>, scalar_prefetch = 0 : i64, scratch_operands = 0 : i64, tpu.core_type = #tpu.core_type<tc>, window_params = [{transform_indices = @transform_0, window_bounds = array<i64: 8, 2>}, {pipeline_mode = #tpu.pipeline_mode<synchronous>, transform_indices = @transform_1, window_bounds = array<i64: 4, 128, 128>}, {pipeline_mode = #tpu.pipeline_mode<synchronous>, transform_indices = @transform_2, window_bounds = array<i64: 8, 128>}, {transform_indices = @transform_3, window_bounds = array<i64: 8, 128>}]} {
    %c0 = arith.constant 0 : index
    %c0_0 = arith.constant 0 : index
    %0 = vector.load %arg1[%c0, %c0_0] : memref<8x2xf32, #tpu.memory_space<vmem>>, vector<8x2xf32>
    %c0_1 = arith.constant 0 : index
    %c0_2 = arith.constant 0 : index
    %1 = vector.load %arg3[%c0_1, %c0_2] : memref<8x128xf32, #tpu.memory_space<vmem>>, vector<8x128xf32>
    %2 = vector.extract_strided_slice %0 {offsets = [0, 0], sizes = [8, 1], strides = [1, 1]} : vector<8x2xf32> to vector<8x1xf32>
    %3 = vector.extract_strided_slice %1 {offsets = [0, 0], sizes = [1, 128], strides = [1, 1]} : vector<8x128xf32> to vector<1x128xf32>
    %4 = vector.broadcast %2 : vector<8x1xf32> to vector<8x128xf32>
    %5 = vector.broadcast %3 : vector<1x128xf32> to vector<8x128xf32>
    %6 = arith.mulf %4, %5 : vector<8x128xf32>
    %7 = vector.extract_strided_slice %0 {offsets = [0, 1], sizes = [8, 1], strides = [1, 1]} : vector<8x2xf32> to vector<8x1xf32>
    %8 = vector.extract_strided_slice %1 {offsets = [1, 0], sizes = [1, 128], strides = [1, 1]} : vector<8x128xf32> to vector<1x128xf32>
    %9 = vector.broadcast %7 : vector<8x1xf32> to vector<8x128xf32>
    %10 = vector.broadcast %8 : vector<1x128xf32> to vector<8x128xf32>
    %11 = arith.mulf %9, %10 : vector<8x128xf32>
    %12 = arith.addf %6, %11 : vector<8x128xf32>
    %13 = vector.extract_strided_slice %1 {offsets = [2, 0], sizes = [1, 128], strides = [1, 1]} : vector<8x128xf32> to vector<1x128xf32>
    %14 = vector.broadcast %13 : vector<1x128xf32> to vector<8x128xf32>
    %15 = arith.addf %12, %14 : vector<8x128xf32>
    %cst = arith.constant 0.000000e+00 : f32
    %16 = vector.broadcast %cst : f32 to vector<8x128xf32>
    %17 = arith.maximumf %15, %16 : vector<8x128xf32>
    %c0_3 = arith.constant 0 : index
    %c0_4 = arith.constant 0 : index
    %c0_5 = arith.constant 0 : index
    %18 = vector.load %arg2[%c0_3, %c0_4, %c0_5] : memref<4x128x128xf32, #tpu.memory_space<vmem>>, vector<1x128x128xf32>
    %19 = vector.shape_cast %18 : vector<1x128x128xf32> to vector<128x128xf32>
    %cst_6 = arith.constant dense<0.000000e+00> : vector<8x128xf32>
    %20 = tpu.matmul %17, %19, %cst_6 {dimension_numbers = #tpu.dot_dimension_numbers<[1], [0], [0], [1], [0, 0, 1, 1], [], []>} : vector<8x128xf32>, vector<128x128xf32>, vector<8x128xf32> -> vector<8x128xf32>
    %21 = vector.extract_strided_slice %1 {offsets = [3, 0], sizes = [1, 128], strides = [1, 1]} : vector<8x128xf32> to vector<1x128xf32>
    %22 = vector.broadcast %21 : vector<1x128xf32> to vector<8x128xf32>
    %23 = arith.addf %20, %22 : vector<8x128xf32>
    %cst_7 = arith.constant 0.000000e+00 : f32
    %24 = vector.broadcast %cst_7 : f32 to vector<8x128xf32>
    %25 = arith.maximumf %23, %24 : vector<8x128xf32>
    %c1 = arith.constant 1 : index
    %c0_8 = arith.constant 0 : index
    %c0_9 = arith.constant 0 : index
    %26 = vector.load %arg2[%c1, %c0_8, %c0_9] : memref<4x128x128xf32, #tpu.memory_space<vmem>>, vector<1x128x128xf32>
    %27 = vector.shape_cast %26 : vector<1x128x128xf32> to vector<128x128xf32>
    %cst_10 = arith.constant dense<0.000000e+00> : vector<8x128xf32>
    %28 = tpu.matmul %25, %27, %cst_10 {dimension_numbers = #tpu.dot_dimension_numbers<[1], [0], [0], [1], [0, 0, 1, 1], [], []>} : vector<8x128xf32>, vector<128x128xf32>, vector<8x128xf32> -> vector<8x128xf32>
    %29 = vector.extract_strided_slice %1 {offsets = [4, 0], sizes = [1, 128], strides = [1, 1]} : vector<8x128xf32> to vector<1x128xf32>
    %30 = vector.broadcast %29 : vector<1x128xf32> to vector<8x128xf32>
    %31 = arith.addf %28, %30 : vector<8x128xf32>
    %cst_11 = arith.constant 0.000000e+00 : f32
    %32 = vector.broadcast %cst_11 : f32 to vector<8x128xf32>
    %33 = arith.maximumf %31, %32 : vector<8x128xf32>
    %c2 = arith.constant 2 : index
    %c0_12 = arith.constant 0 : index
    %c0_13 = arith.constant 0 : index
    %34 = vector.load %arg2[%c2, %c0_12, %c0_13] : memref<4x128x128xf32, #tpu.memory_space<vmem>>, vector<1x128x128xf32>
    %35 = vector.shape_cast %34 : vector<1x128x128xf32> to vector<128x128xf32>
    %cst_14 = arith.constant dense<0.000000e+00> : vector<8x128xf32>
    %36 = tpu.matmul %33, %35, %cst_14 {dimension_numbers = #tpu.dot_dimension_numbers<[1], [0], [0], [1], [0, 0, 1, 1], [], []>} : vector<8x128xf32>, vector<128x128xf32>, vector<8x128xf32> -> vector<8x128xf32>
    %37 = vector.extract_strided_slice %1 {offsets = [5, 0], sizes = [1, 128], strides = [1, 1]} : vector<8x128xf32> to vector<1x128xf32>
    %38 = vector.broadcast %37 : vector<1x128xf32> to vector<8x128xf32>
    %39 = arith.addf %36, %38 : vector<8x128xf32>
    %cst_15 = arith.constant 0.000000e+00 : f32
    %40 = vector.broadcast %cst_15 : f32 to vector<8x128xf32>
    %41 = arith.maximumf %39, %40 : vector<8x128xf32>
    %c3 = arith.constant 3 : index
    %c0_16 = arith.constant 0 : index
    %c0_17 = arith.constant 0 : index
    %42 = vector.load %arg2[%c3, %c0_16, %c0_17] : memref<4x128x128xf32, #tpu.memory_space<vmem>>, vector<1x128x128xf32>
    %43 = vector.shape_cast %42 : vector<1x128x128xf32> to vector<128x128xf32>
    %cst_18 = arith.constant dense<0.000000e+00> : vector<8x128xf32>
    %44 = tpu.matmul %41, %43, %cst_18 {dimension_numbers = #tpu.dot_dimension_numbers<[1], [0], [0], [1], [0, 0, 1, 1], [], []>} : vector<8x128xf32>, vector<128x128xf32>, vector<8x128xf32> -> vector<8x128xf32>
    %45 = vector.extract_strided_slice %1 {offsets = [6, 0], sizes = [1, 128], strides = [1, 1]} : vector<8x128xf32> to vector<1x128xf32>
    %46 = vector.broadcast %45 : vector<1x128xf32> to vector<8x128xf32>
    %47 = arith.addf %44, %46 : vector<8x128xf32>
    %c0_19 = arith.constant 0 : index
    %c0_20 = arith.constant 0 : index
    %48 = vector.load %arg4[%c0_19, %c0_20] : memref<8x128xf32, #tpu.memory_space<vmem>>, vector<8x128xf32>
    tpu.vector_store %arg4[%c0_19, %c0_20], %47 {strides = array<i32>} : memref<8x128xf32, #tpu.memory_space<vmem>>, vector<8x128xf32>,
    return
  }
  func.func @transform_0(%arg0: i32) -> (i32, i32) {
    %c0_i32 = arith.constant 0 : i32
    %c0_i32_0 = arith.constant 0 : i32
    return %arg0, %c0_i32 : i32, i32
  }
  func.func @transform_1(%arg0: i32) -> (i32, i32, i32) {
    %c0_i32 = arith.constant 0 : i32
    %c0_i32_0 = arith.constant 0 : i32
    %c0_i32_1 = arith.constant 0 : i32
    %c0_i32_2 = arith.constant 0 : i32
    return %c0_i32, %c0_i32_0, %c0_i32_1 : i32, i32, i32
  }
  func.func @transform_2(%arg0: i32) -> (i32, i32) {
    %c0_i32 = arith.constant 0 : i32
    %c0_i32_0 = arith.constant 0 : i32
    %c0_i32_1 = arith.constant 0 : i32
    return %c0_i32, %c0_i32_0 : i32, i32
  }
  func.func @transform_3(%arg0: i32) -> (i32, i32) {
    %c0_i32 = arith.constant 0 : i32
    %c0_i32_0 = arith.constant 0 : i32
    return %arg0, %c0_i32 : i32, i32
  }
}

</mosaic_0001>

<llo_original>
// kernel: qnetwork_forward.1
$region0: #{qnetwork_forward.1}
  #allocation0 [shape = 'u32[]', space=smem, size = 0x4, offset = 0x4, fixed_abs, tag = 'smem constant byte address 0x4 - core index']
  #allocation1 [shape = 'u32[144,128]{1,0:T(1,128)}', space=vmem, size = 0x12000, scoped, tag = 'internal scratch']
  %s0 = inlined_call_operand.vmem [shape: f32[8,2], index: 0, kind: input, shape index: {}]
  %s1 = inlined_call_operand.hbm [shape: f32[4,128,128], index: 1, kind: input, shape index: {}]
  %s2 = inlined_call_operand.vmem [shape: f32[8,128], index: 2, kind: input, shape index: {}]
  %s3 = inlined_call_operand.vmem [shape: f32[8,128], index: 3, kind: output, shape index: {}]
  %s4 = sld [smem:[#allocation0]]
  $region26: #{qnetwork_forward.1} parent=0
    _
  %s6 = ssub.s32 1, %s4
  %s7 = scalar_select 0, %s6, %s4
  $region1: #{qnetwork_forward.1} parent=0
    #allocation2 [shape = 'u8[262144]{0}', space=vmem, size = 0x40000, scoped, tag = 'input window, operand 1, single buffered']
    #allocation3 [shape = 's32[1]{0}', space=sflag, size = 0x4, scoped, tag = 'scoped memory for qnetwork_forward.1']
    %8 = vsyncpa [#allocation3], 0
    // Predicated region
    $region2: #{qnetwork_forward.1} parent=1 // pred_check
      _
    $region3: #{qnetwork_forward.1} parent=1 // pred_check_branch
      %10 = sbr.rel (0) target = $region5
    $region4: #{qnetwork_forward.1} parent=1 // pred_region
      _
    $region5: #{qnetwork_forward.1} parent=1 // pred_fallthru
      _
    // Predicated region
    $region6: #{qnetwork_forward.1} parent=1 // pred_check
      _
    $region7: #{qnetwork_forward.1} parent=1 // pred_check_branch
      %12 = sbr.rel (0) target = $region9
    $region8: #{qnetwork_forward.1} parent=1 // pred_region
      %s14 = ssub.s32 8192, 8192
      %15 = vsyncadd [#allocation3], %s14
      %s16 = sshll.u32 [#allocation2], 4
      %s17 = int_to_ptr.vmem [resolvable:$true] %s16
      %22 = dma.hbm_to_vmem [thread:$0]  %s1, 8192, %s17, [#allocation3], 128, 128, 8
    $region9: #{qnetwork_forward.1} parent=1 // pred_fallthru
      _
    // Predicated region
    $region10: #{qnetwork_forward.1} parent=1 // pred_check
      _
    $region11: #{qnetwork_forward.1} parent=1 // pred_check_branch
      %24 = sbr.rel (0) target = $region13
    $region12: #{qnetwork_forward.1} parent=1 // pred_region
      _
    $region13: #{qnetwork_forward.1} parent=1 // pred_fallthru
      _
    // Predicated region
    $region14: #{qnetwork_forward.1} parent=1 // pred_check
      _
    $region15: #{qnetwork_forward.1} parent=1 // pred_check_branch
      %26 = sbr.rel (0) target = $region17
    $region16: #{qnetwork_forward.1} parent=1 // pred_region
      %27 = dma.done [#allocation3], 8192
    $region17: #{qnetwork_forward.1} parent=1 // pred_fallthru
      _
    %v28 = vld [vmem:[%s0] sm:$0xff]
    %v29 = vld [vmem:[%s2] sm:$0xff]
    %31 = vset.pattern.permute.xlu0 0
    %32 = vperm.xlu0 %31, %v28
    %v33 = vpop.permute.xlu0 %32
    %v35 = vlaneseq
    %v36 = vshrl.u32 %v35, 7
    %v37 = vsub.s32 0, %v36
    %v38 = vrot.slane %v29, %v37
    %v39 = vmul.f32 %v33, %v38
    %40 = vset.pattern.permute.xlu0 1
    %41 = vperm.xlu0 %40, %v28
    %v42 = vpop.permute.xlu0 %41
    %v44 = vlaneseq
    %v45 = vshrl.u32 %v44, 7
    %v46 = vsub.s32 1, %v45
    %v47 = vrot.slane %v29, %v46
    %v48 = vmul.f32 %v42, %v47
    %v49 = vadd.f32 %v39, %v48
    %v50 = vlaneseq
    %v51 = vshrl.u32 %v50, 7
    %v52 = vsub.s32 2, %v51
    %v53 = vrot.slane %v29, %v52
    %v54 = vadd.f32 %v49, %v53
    %v55 = vmax.f32 %v54, 0.0
    %v56 = vld [vmem:[#allocation2] sm:$0xff]
    %v57 = vld [vmem:[#allocation2 + $0x8] sm:$0xff]
    %v58 = vld [vmem:[#allocation2 + $0x10] sm:$0xff]
    %v59 = vld [vmem:[#allocation2 + $0x18] sm:$0xff]
    %v60 = vld [vmem:[#allocation2 + $0x20] sm:$0xff]
    %v61 = vld [vmem:[#allocation2 + $0x28] sm:$0xff]
    %v62 = vld [vmem:[#allocation2 + $0x30] sm:$0xff]
    %v63 = vld [vmem:[#allocation2 + $0x38] sm:$0xff]
    %v64 = vld [vmem:[#allocation2 + $0x40] sm:$0xff]
    %v65 = vld [vmem:[#allocation2 + $0x48] sm:$0xff]
    %v66 = vld [vmem:[#allocation2 + $0x50] sm:$0xff]
    %v67 = vld [vmem:[#allocation2 + $0x58] sm:$0xff]
    %v68 = vld [vmem:[#allocation2 + $0x60] sm:$0xff]
    %v69 = vld [vmem:[#allocation2 + $0x68] sm:$0xff]
    %v70 = vld [vmem:[#allocation2 + $0x70] sm:$0xff]
    %v71 = vld [vmem:[#allocation2 + $0x78] sm:$0xff]
    %v72 = vlaneseq
    %v73 = vshrl.u32 %v72, 7
    %v74 = vsub.s32 3, %v73
    %v75 = vrot.slane %v29, %v74
    %76 = vmatprep.subr.mxu0 0.0
    %77 = vmatpush1.msra.mxu0 %v71
    %78 = vmatprep.subr.mxu0 0.0
    %79 = vmatpush1.msra.mxu0 %v70
    %80 = vmatprep.subr.mxu0 0.0
    %81 = vmatpush1.msra.mxu0 %v69
    %82 = vmatprep.subr.mxu0 0.0
    %83 = vmatpush1.msra.mxu0 %v68
    %84 = vmatprep.subr.mxu0 0.0
    %85 = vmatpush1.msra.mxu0 %v67
    %86 = vmatprep.subr.mxu0 0.0
    %87 = vmatpush1.msra.mxu0 %v66
    %88 = vmatprep.subr.mxu0 0.0
    %89 = vmatpush1.msra.mxu0 %v65
    %90 = vmatprep.subr.mxu0 0.0
    %91 = vmatpush1.msra.mxu0 %v64
    %92 = vmatprep.subr.mxu0 0.0
    %93 = vmatpush1.msra.mxu0 %v63
    %94 = vmatprep.subr.mxu0 0.0
    %95 = vmatpush1.msra.mxu0 %v62
    %96 = vmatprep.subr.mxu0 0.0
    %97 = vmatpush1.msra.mxu0 %v61
    %98 = vmatprep.subr.mxu0 0.0
    %99 = vmatpush1.msra.mxu0 %v60
    %100 = vmatprep.subr.mxu0 0.0
    %101 = vmatpush1.msra.mxu0 %v59
    %102 = vmatprep.subr.mxu0 0.0
    %103 = vmatpush1.msra.mxu0 %v58
    %104 = vmatprep.subr.mxu0 0.0
    %105 = vmatpush1.msra.mxu0 %v57
    %106 = vmatprep.subr.mxu0 0.0
    %107 = vmatpush1.msra.mxu0 %v56
    %108 = vmatprep.subr.mxu0 0.0
    %109 = vmatpush2.msra.mxu0 0.0
    %110 = vmatprep.subr.mxu0 0.0
    %111 = vmatpush2.msra.mxu0 0.0
    %112 = vmatprep.subr.mxu0 0.0
    %113 = vmatpush2.msra.mxu0 0.0
    %114 = vmatprep.subr.mxu0 0.0
    %115 = vmatpush2.msra.mxu0 0.0
    %116 = vmatprep.subr.mxu0 0.0
    %117 = vmatpush2.msra.mxu0 0.0
    %118 = vmatprep.subr.mxu0 0.0
    %119 = vmatpush2.msra.mxu0 0.0
    %120 = vmatprep.subr.mxu0 0.0
    %121 = vmatpush2.msra.mxu0 0.0
    %122 = vmatprep.subr.mxu0 0.0
    %123 = vmatpush2.msra.mxu0 0.0
    %124 = vmatprep.subr.mxu0 0.0
    %125 = vmatpush2.msra.mxu0 0.0
    %126 = vmatprep.subr.mxu0 0.0
    %127 = vmatpush2.msra.mxu0 0.0
    %128 = vmatprep.subr.mxu0 0.0
    %129 = vmatpush2.msra.mxu0 0.0
    %130 = vmatprep.subr.mxu0 0.0
    %131 = vmatpush2.msra.mxu0 0.0
    %132 = vmatprep.subr.mxu0 0.0
    %133 = vmatpush2.msra.mxu0 0.0
    %134 = vmatprep.subr.mxu0 0.0
    %135 = vmatpush2.msra.mxu0 0.0
    %136 = vmatprep.subr.mxu0 0.0
    %137 = vmatpush2.msra.mxu0 0.0
    %138 = vmatprep.subr.mxu0 0.0
    %139 = vmatpush2.msra.mxu0 0.0
    %140 = vmatprep.mubr.f32.mxu0 0.0
    %141 = vmatmul.mubr.f32.gmra.mxu0 %v55
    %v142 = vpop.f32.mrf.mxu0
    %v143 = vadd.f32 %v75, %v142
    %v144 = vpop.f32.mrf.mxu0
    %145 = vdwg.mxu0
    %v146 = vmax.f32 %v143, 0.0
    %s147 = scalar_lea.vmem [#allocation2], 128
    %v148 = vld [vmem:[%s147] sm:$0xff]
    %v149 = vld [vmem:[%s147 + $0x8] sm:$0xff]
    %v150 = vld [vmem:[%s147 + $0x10] sm:$0xff]
    %v151 = vld [vmem:[%s147 + $0x18] sm:$0xff]
    %v152 = vld [vmem:[%s147 + $0x20] sm:$0xff]
    %v153 = vld [vmem:[%s147 + $0x28] sm:$0xff]
    %v154 = vld [vmem:[%s147 + $0x30] sm:$0xff]
    %v155 = vld [vmem:[%s147 + $0x38] sm:$0xff]
    %v156 = vld [vmem:[%s147 + $0x40] sm:$0xff]
    %v157 = vld [vmem:[%s147 + $0x48] sm:$0xff]
    %v158 = vld [vmem:[%s147 + $0x50] sm:$0xff]
    %v159 = vld [vmem:[%s147 + $0x58] sm:$0xff]
    %v160 = vld [vmem:[%s147 + $0x60] sm:$0xff]
    %v161 = vld [vmem:[%s147 + $0x68] sm:$0xff]
    %v162 = vld [vmem:[%s147 + $0x70] sm:$0xff]
    %v163 = vld [vmem:[%s147 + $0x78] sm:$0xff]
    %v164 = vlaneseq
    %v165 = vshrl.u32 %v164, 7
    %v166 = vsub.s32 4, %v165
    %v167 = vrot.slane %v29, %v166
    %168 = vmatprep.subr.mxu0 0.0
    %169 = vmatpush1.msra.mxu0 %v163
    %170 = vmatprep.subr.mxu0 0.0
    %171 = vmatpush1.msra.mxu0 %v162
    %172 = vmatprep.subr.mxu0 0.0
    %173 = vmatpush1.msra.mxu0 %v161
    %174 = vmatprep.subr.mxu0 0.0
    %175 = vmatpush1.msra.mxu0 %v160
    %176 = vmatprep.subr.mxu0 0.0
    %177 = vmatpush1.msra.mxu0 %v159
    %178 = vmatprep.subr.mxu0 0.0
    %179 = vmatpush1.msra.mxu0 %v158
    %180 = vmatprep.subr.mxu0 0.0
    %181 = vmatpush1.msra.mxu0 %v157
    %182 = vmatprep.subr.mxu0 0.0
    %183 = vmatpush1.msra.mxu0 %v156
    %184 = vmatprep.subr.mxu0 0.0
    %185 = vmatpush1.msra.mxu0 %v155
    %186 = vmatprep.subr.mxu0 0.0
    %187 = vmatpush1.msra.mxu0 %v154
    %188 = vmatprep.subr.mxu0 0.0
    %189 = vmatpush1.msra.mxu0 %v153
    %190 = vmatprep.subr.mxu0 0.0
    %191 = vmatpush1.msra.mxu0 %v152
    %192 = vmatprep.subr.mxu0 0.0
    %193 = vmatpush1.msra.mxu0 %v151
    %194 = vmatprep.subr.mxu0 0.0
    %195 = vmatpush1.msra.mxu0 %v150
    %196 = vmatprep.subr.mxu0 0.0
    %197 = vmatpush1.msra.mxu0 %v149
    %198 = vmatprep.subr.mxu0 0.0
    %199 = vmatpush1.msra.mxu0 %v148
    %200 = vmatprep.subr.mxu0 0.0
    %201 = vmatpush2.msra.mxu0 0.0
    %202 = vmatprep.subr.mxu0 0.0
    %203 = vmatpush2.msra.mxu0 0.0
    %204 = vmatprep.subr.mxu0 0.0
    %205 = vmatpush2.msra.mxu0 0.0
    %206 = vmatprep.subr.mxu0 0.0
    %207 = vmatpush2.msra.mxu0 0.0
    %208 = vmatprep.subr.mxu0 0.0
    %209 = vmatpush2.msra.mxu0 0.0
    %210 = vmatprep.subr.mxu0 0.0
    %211 = vmatpush2.msra.mxu0 0.0
    %212 = vmatprep.subr.mxu0 0.0
    %213 = vmatpush2.msra.mxu0 0.0
    %214 = vmatprep.subr.mxu0 0.0
    %215 = vmatpush2.msra.mxu0 0.0
    %216 = vmatprep.subr.mxu0 0.0
    %217 = vmatpush2.msra.mxu0 0.0
    %218 = vmatprep.subr.mxu0 0.0
    %219 = vmatpush2.msra.mxu0 0.0
    %220 = vmatprep.subr.mxu0 0.0
    %221 = vmatpush2.msra.mxu0 0.0
    %222 = vmatprep.subr.mxu0 0.0
    %223 = vmatpush2.msra.mxu0 0.0
    %224 = vmatprep.subr.mxu0 0.0
    %225 = vmatpush2.msra.mxu0 0.0
    %226 = vmatprep.subr.mxu0 0.0
    %227 = vmatpush2.msra.mxu0 0.0
    %228 = vmatprep.subr.mxu0 0.0
    %229 = vmatpush2.msra.mxu0 0.0
    %230 = vmatprep.subr.mxu0 0.0
    %231 = vmatpush2.msra.mxu0 0.0
    %232 = vmatprep.mubr.f32.mxu0 0.0
    %233 = vmatmul.mubr.f32.gmra.mxu0 %v146
    %v234 = vpop.f32.mrf.mxu0
    %v235 = vadd.f32 %v167, %v234
    %v236 = vpop.f32.mrf.mxu0
    %237 = vdwg.mxu0
    %v238 = vmax.f32 %v235, 0.0
    %s239 = scalar_lea.vmem [#allocation2], 256
    %v240 = vld [vmem:[%s239] sm:$0xff]
    %v241 = vld [vmem:[%s239 + $0x8] sm:$0xff]
    %v242 = vld [vmem:[%s239 + $0x10] sm:$0xff]
    %v243 = vld [vmem:[%s239 + $0x18] sm:$0xff]
    %v244 = vld [vmem:[%s239 + $0x20] sm:$0xff]
    %v245 = vld [vmem:[%s239 + $0x28] sm:$0xff]
    %v246 = vld [vmem:[%s239 + $0x30] sm:$0xff]
    %v247 = vld [vmem:[%s239 + $0x38] sm:$0xff]
    %v248 = vld [vmem:[%s239 + $0x40] sm:$0xff]
    %v249 = vld [vmem:[%s239 + $0x48] sm:$0xff]
    %v250 = vld [vmem:[%s239 + $0x50] sm:$0xff]
    %v251 = vld [vmem:[%s239 + $0x58] sm:$0xff]
    %v252 = vld [vmem:[%s239 + $0x60] sm:$0xff]
    %v253 = vld [vmem:[%s239 + $0x68] sm:$0xff]
    %v254 = vld [vmem:[%s239 + $0x70] sm:$0xff]
    %v255 = vld [vmem:[%s239 + $0x78] sm:$0xff]
    %v256 = vlaneseq
    %v257 = vshrl.u32 %v256, 7
    %v258 = vsub.s32 5, %v257
    %v259 = vrot.slane %v29, %v258
    %260 = vmatprep.subr.mxu0 0.0
    %261 = vmatpush1.msra.mxu0 %v255
    %262 = vmatprep.subr.mxu0 0.0
    %263 = vmatpush1.msra.mxu0 %v254
    %264 = vmatprep.subr.mxu0 0.0
    %265 = vmatpush1.msra.mxu0 %v253
    %266 = vmatprep.subr.mxu0 0.0
    %267 = vmatpush1.msra.mxu0 %v252
    %268 = vmatprep.subr.mxu0 0.0
    %269 = vmatpush1.msra.mxu0 %v251
    %270 = vmatprep.subr.mxu0 0.0
    %271 = vmatpush1.msra.mxu0 %v250
    %272 = vmatprep.subr.mxu0 0.0
    %273 = vmatpush1.msra.mxu0 %v249
    %274 = vmatprep.subr.mxu0 0.0
    %275 = vmatpush1.msra.mxu0 %v248
    %276 = vmatprep.subr.mxu0 0.0
    %277 = vmatpush1.msra.mxu0 %v247
    %278 = vmatprep.subr.mxu0 0.0
    %279 = vmatpush1.msra.mxu0 %v246
    %280 = vmatprep.subr.mxu0 0.0
    %281 = vmatpush1.msra.mxu0 %v245
    %282 = vmatprep.subr.mxu0 0.0
    %283 = vmatpush1.msra.mxu0 %v244
    %284 = vmatprep.subr.mxu0 0.0
    %285 = vmatpush1.msra.mxu0 %v243
    %286 = vmatprep.subr.mxu0 0.0
    %287 = vmatpush1.msra.mxu0 %v242
    %288 = vmatprep.subr.mxu0 0.0
    %289 = vmatpush1.msra.mxu0 %v241
    %290 = vmatprep.subr.mxu0 0.0
    %291 = vmatpush1.msra.mxu0 %v240
    %292 = vmatprep.subr.mxu0 0.0
    %293 = vmatpush2.msra.mxu0 0.0
    %294 = vmatprep.subr.mxu0 0.0
    %295 = vmatpush2.msra.mxu0 0.0
    %296 = vmatprep.subr.mxu0 0.0
    %297 = vmatpush2.msra.mxu0 0.0
    %298 = vmatprep.subr.mxu0 0.0
    %299 = vmatpush2.msra.mxu0 0.0
    %300 = vmatprep.subr.mxu0 0.0
    %301 = vmatpush2.msra.mxu0 0.0
    %302 = vmatprep.subr.mxu0 0.0
    %303 = vmatpush2.msra.mxu0 0.0
    %304 = vmatprep.subr.mxu0 0.0
    %305 = vmatpush2.msra.mxu0 0.0
    %306 = vmatprep.subr.mxu0 0.0
    %307 = vmatpush2.msra.mxu0 0.0
    %308 = vmatprep.subr.mxu0 0.0
    %309 = vmatpush2.msra.mxu0 0.0
    %310 = vmatprep.subr.mxu0 0.0
    %311 = vmatpush2.msra.mxu0 0.0
    %312 = vmatprep.subr.mxu0 0.0
    %313 = vmatpush2.msra.mxu0 0.0
    %314 = vmatprep.subr.mxu0 0.0
    %315 = vmatpush2.msra.mxu0 0.0
    %316 = vmatprep.subr.mxu0 0.0
    %317 = vmatpush2.msra.mxu0 0.0
    %318 = vmatprep.subr.mxu0 0.0
    %319 = vmatpush2.msra.mxu0 0.0
    %320 = vmatprep.subr.mxu0 0.0
    %321 = vmatpush2.msra.mxu0 0.0
    %322 = vmatprep.subr.mxu0 0.0
    %323 = vmatpush2.msra.mxu0 0.0
    %324 = vmatprep.mubr.f32.mxu0 0.0
    %325 = vmatmul.mubr.f32.gmra.mxu0 %v238
    %v326 = vpop.f32.mrf.mxu0
    %v327 = vadd.f32 %v259, %v326
    %v328 = vpop.f32.mrf.mxu0
    %329 = vdwg.mxu0
    %v330 = vmax.f32 %v327, 0.0
    %s331 = scalar_lea.vmem [#allocation2], 384
    %v332 = vld [vmem:[%s331] sm:$0xff]
    %v333 = vld [vmem:[%s331 + $0x8] sm:$0xff]
    %v334 = vld [vmem:[%s331 + $0x10] sm:$0xff]
    %v335 = vld [vmem:[%s331 + $0x18] sm:$0xff]
    %v336 = vld [vmem:[%s331 + $0x20] sm:$0xff]
    %v337 = vld [vmem:[%s331 + $0x28] sm:$0xff]
    %v338 = vld [vmem:[%s331 + $0x30] sm:$0xff]
    %v339 = vld [vmem:[%s331 + $0x38] sm:$0xff]
    %v340 = vld [vmem:[%s331 + $0x40] sm:$0xff]
    %v341 = vld [vmem:[%s331 + $0x48] sm:$0xff]
    %v342 = vld [vmem:[%s331 + $0x50] sm:$0xff]
    %v343 = vld [vmem:[%s331 + $0x58] sm:$0xff]
    %v344 = vld [vmem:[%s331 + $0x60] sm:$0xff]
    %v345 = vld [vmem:[%s331 + $0x68] sm:$0xff]
    %v346 = vld [vmem:[%s331 + $0x70] sm:$0xff]
    %v347 = vld [vmem:[%s331 + $0x78] sm:$0xff]
    %v348 = vlaneseq
    %v349 = vshrl.u32 %v348, 7
    %v350 = vsub.s32 6, %v349
    %v351 = vrot.slane %v29, %v350
    %352 = vmatprep.subr.mxu0 0.0
    %353 = vmatpush1.msra.mxu0 %v347
    %354 = vmatprep.subr.mxu0 0.0
    %355 = vmatpush1.msra.mxu0 %v346
    %356 = vmatprep.subr.mxu0 0.0
    %357 = vmatpush1.msra.mxu0 %v345
    %358 = vmatprep.subr.mxu0 0.0
    %359 = vmatpush1.msra.mxu0 %v344
    %360 = vmatprep.subr.mxu0 0.0
    %361 = vmatpush1.msra.mxu0 %v343
    %362 = vmatprep.subr.mxu0 0.0
    %363 = vmatpush1.msra.mxu0 %v342
    %364 = vmatprep.subr.mxu0 0.0
    %365 = vmatpush1.msra.mxu0 %v341
    %366 = vmatprep.subr.mxu0 0.0
    %367 = vmatpush1.msra.mxu0 %v340
    %368 = vmatprep.subr.mxu0 0.0
    %369 = vmatpush1.msra.mxu0 %v339
    %370 = vmatprep.subr.mxu0 0.0
    %371 = vmatpush1.msra.mxu0 %v338
    %372 = vmatprep.subr.mxu0 0.0
    %373 = vmatpush1.msra.mxu0 %v337
    %374 = vmatprep.subr.mxu0 0.0
    %375 = vmatpush1.msra.mxu0 %v336
    %376 = vmatprep.subr.mxu0 0.0
    %377 = vmatpush1.msra.mxu0 %v335
    %378 = vmatprep.subr.mxu0 0.0
    %379 = vmatpush1.msra.mxu0 %v334
    %380 = vmatprep.subr.mxu0 0.0
    %381 = vmatpush1.msra.mxu0 %v333
    %382 = vmatprep.subr.mxu0 0.0
    %383 = vmatpush1.msra.mxu0 %v332
    %384 = vmatprep.subr.mxu0 0.0
    %385 = vmatpush2.msra.mxu0 0.0
    %386 = vmatprep.subr.mxu0 0.0
    %387 = vmatpush2.msra.mxu0 0.0
    %388 = vmatprep.subr.mxu0 0.0
    %389 = vmatpush2.msra.mxu0 0.0
    %390 = vmatprep.subr.mxu0 0.0
    %391 = vmatpush2.msra.mxu0 0.0
    %392 = vmatprep.subr.mxu0 0.0
    %393 = vmatpush2.msra.mxu0 0.0
    %394 = vmatprep.subr.mxu0 0.0
    %395 = vmatpush2.msra.mxu0 0.0
    %396 = vmatprep.subr.mxu0 0.0
    %397 = vmatpush2.msra.mxu0 0.0
    %398 = vmatprep.subr.mxu0 0.0
    %399 = vmatpush2.msra.mxu0 0.0
    %400 = vmatprep.subr.mxu0 0.0
    %401 = vmatpush2.msra.mxu0 0.0
    %402 = vmatprep.subr.mxu0 0.0
    %403 = vmatpush2.msra.mxu0 0.0
    %404 = vmatprep.subr.mxu0 0.0
    %405 = vmatpush2.msra.mxu0 0.0
    %406 = vmatprep.subr.mxu0 0.0
    %407 = vmatpush2.msra.mxu0 0.0
    %408 = vmatprep.subr.mxu0 0.0
    %409 = vmatpush2.msra.mxu0 0.0
    %410 = vmatprep.subr.mxu0 0.0
    %411 = vmatpush2.msra.mxu0 0.0
    %412 = vmatprep.subr.mxu0 0.0
    %413 = vmatpush2.msra.mxu0 0.0
    %414 = vmatprep.subr.mxu0 0.0
    %415 = vmatpush2.msra.mxu0 0.0
    %416 = vmatprep.mubr.f32.mxu0 0.0
    %417 = vmatmul.mubr.f32.gmra.mxu0 %v330
    %v418 = vpop.f32.mrf.mxu0
    %v419 = vadd.f32 %v351, %v418
    %v420 = vpop.f32.mrf.mxu0
    %421 = vdwg.mxu0
    %422 = vst [vmem:[%s3] sm:$0xff] %v419
    // Predicated region
    $region18: #{qnetwork_forward.1} parent=1 // pred_check
      _
    $region19: #{qnetwork_forward.1} parent=1 // pred_check_branch
      %424 = sbr.rel (0) target = $region21
    $region20: #{qnetwork_forward.1} parent=1 // pred_region
      _
    $region21: #{qnetwork_forward.1} parent=1 // pred_fallthru
      _
    // Predicated region
    $region22: #{qnetwork_forward.1} parent=1 // pred_check
      _
    $region23: #{qnetwork_forward.1} parent=1 // pred_check_branch
      %426 = sbr.rel (0) target = $region25
    $region24: #{qnetwork_forward.1} parent=1 // pred_region
      _
    $region25: #{qnetwork_forward.1} parent=1 // pred_fallthru
      _
    %427 = vsyncpa [#allocation3], 1

</llo_original>
